<compile_context>
chip_gen: v7x
topology: tpu7x:2x2x1
jax: 0.10.0
libtpu: 0.0.40
codegen_flags: <defaults>
</compile_context>

<pallas_src>
import jax
import jax.numpy as jnp
from jax.experimental import pallas as pl
from jax.experimental.pallas import tpu as pltpu

EPS = 1e-5  # nn.BatchNorm2d default eps


def attention_block_kernel(gx_ref, x_ref, wb_ref, p_ref, o_ref):
    f2 = wb_ref.shape[0]          # 2 * F_int
    f_int = f2 // 2
    m = gx_ref.shape[1]
    inv_m = 1.0 / m

    gx = gx_ref[...]              # (Cg+Cl, M)   concatenated [g; x]
    x = x_ref[...]                # (Cl, M)      gating input
    wb = wb_ref[...]              # (2F, Cg+Cl)  block-diagonal fused weight
    p = p_ref[...]                # (2F, 8)      packed params

    bias = p[:, 0:1]              # (2F, 1)  [b_g ; b_x]
    gamma = p[:, 1:2]             # (2F, 1)  [gamma_g ; gamma_x]
    beta = p[:, 2:3]              # (2F, 1)  [beta_g ; beta_x]
    wp = p[:f_int, 3:4]           # (F, 1)   psi conv weight
    bp = p[0:1, 4:5]              # (1, 1)   psi conv bias
    gamp = p[0:1, 5:6]            # (1, 1)   psi BN gamma
    betp = p[0:1, 6:7]            # (1, 1)   psi BN beta

    # --- fused W_g / W_x 1x1 convs: one MXU matmul (2F, K) @ (K, M) ---------
    y = jnp.dot(wb, gx, preferred_element_type=jnp.float32) + bias   # (2F, M)

    # --- train-mode BatchNorm over (N,H,W) == lane axis, single-pass stats --
    mu = jnp.sum(y, axis=-1, keepdims=True) * inv_m                  # (2F, 1)
    ex2 = jnp.sum(y * y, axis=-1, keepdims=True) * inv_m
    var = ex2 - mu * mu
    y_bn = (y - mu) * jax.lax.rsqrt(var + EPS) * gamma + beta        # (2F, M)

    a = jnp.maximum(y_bn[:f_int, :] + y_bn[f_int:, :], 0.0)          # (F, M)

    # --- psi: F_int -> 1 conv as a sublane reduce (VPU/XLU, not MXU) --------
    ps = jnp.sum(wp * a, axis=0, keepdims=True) + bp                 # (1, M)
    pmu = jnp.sum(ps, axis=-1, keepdims=True) * inv_m                # (1, 1)
    pex2 = jnp.sum(ps * ps, axis=-1, keepdims=True) * inv_m
    pvar = pex2 - pmu * pmu
    ps_bn = (ps - pmu) * jax.lax.rsqrt(pvar + EPS) * gamp + betp
    psi = jax.nn.sigmoid(ps_bn)                                      # (1, M)

    o_ref[...] = x * psi                                             # (Cl, M)


def attention_block(g_nchw, x_nchw, params):
    N, Cg, H, W = g_nchw.shape
    Cl = x_nchw.shape[1]
    S = H * W
    M = N * S
    F_int = params["wg"].shape[0]

    # NCHW -> (C, N*H*W): only an N<->C permute (no NHWC round trip).
    g2 = jnp.transpose(g_nchw.reshape(N, Cg, S), (1, 0, 2)).reshape(Cg, M)
    g2 = g2.astype(jnp.float32)
    x2 = jnp.transpose(x_nchw.reshape(N, Cl, S), (1, 0, 2)).reshape(Cl, M)
    x2 = x2.astype(jnp.float32)
    gx = jnp.concatenate([g2, x2], axis=0)                 # (Cg+Cl, M)

    # Fused block-diagonal weight: one matmul computes both 1x1 convs.
    Wb = jnp.zeros((2 * F_int, Cg + Cl), jnp.float32)
    Wb = Wb.at[:F_int, :Cg].set(params["wg"])
    Wb = Wb.at[F_int:, Cg:].set(params["wx"])

    # Pack the 12 tiny bias/BN/psi parameters into one (2F, 8) table.
    P = jnp.zeros((2 * F_int, 8), jnp.float32)
    P = P.at[:, 0].set(jnp.concatenate([params["bg"], params["bx"]]))
    P = P.at[:, 1].set(jnp.concatenate([params["gamg"], params["gamx"]]))
    P = P.at[:, 2].set(jnp.concatenate([params["betg"], params["betx"]]))
    P = P.at[:F_int, 3].set(params["wp"])
    P = P.at[0, 4].set(params["bp"][0])
    P = P.at[0, 5].set(params["gamp"][0])
    P = P.at[0, 6].set(params["betp"][0])

    args = (gx, x2, Wb, P)
    in_specs = [pl.BlockSpec(a.shape, lambda i, nd=a.ndim: (0,) * nd)
                for a in args]

    out2 = pl.pallas_call(
        attention_block_kernel,
        out_shape=jax.ShapeDtypeStruct((Cl, M), jnp.float32),
        grid=(1,),
        in_specs=in_specs,
        out_specs=pl.BlockSpec((Cl, M), lambda i: (0, 0)),
        # x2 (gating input) has the output's shape/dtype and is dead after the
        # call -> let XLA reuse its buffer for the result.
        input_output_aliases={1: 0},
        compiler_params=pltpu.CompilerParams(
            dimension_semantics=("arbitrary",),
            vmem_limit_bytes=32 * 1024 * 1024),
    )(*args)

    # (Cl, N*S) -> NCHW via the inverse small permute.
    return out2.reshape(Cl, N, S).transpose(1, 0, 2).reshape(N, Cl, H, W)


def init_params(key, F_g, F_l, F_int):
    ks = jax.random.split(key, 6)
    return {
        # Conv2d 1x1 weights as (Cout, Cin), biases as (Cout,)
        "wg": jax.random.normal(ks[0], (F_int, F_g), jnp.float32) * 0.2,
        "bg": jax.random.normal(ks[1], (F_int,), jnp.float32) * 0.1,
        "wx": jax.random.normal(ks[2], (F_int, F_l), jnp.float32) * 0.2,
        "bx": jax.random.normal(ks[3], (F_int,), jnp.float32) * 0.1,
        "wp": jax.random.normal(ks[4], (F_int,), jnp.float32) * 0.2,
        "bp": jax.random.normal(ks[5], (1,), jnp.float32) * 0.1,
        # BatchNorm affine params at PyTorch init (gamma=1, beta=0)
        "gamg": jnp.ones((F_int,), jnp.float32),
        "betg": jnp.zeros((F_int,), jnp.float32),
        "gamx": jnp.ones((F_int,), jnp.float32),
        "betx": jnp.zeros((F_int,), jnp.float32),
        "gamp": jnp.ones((1,), jnp.float32),
        "betp": jnp.zeros((1,), jnp.float32),
    }


def reference(g_nchw, x_nchw, params):
    """Pure-JAX NCHW reference mirroring the PyTorch forward (train-mode BN)."""
    def conv1x1(inp, w, b):
        return jnp.einsum("nchw,oc->nohw", inp, w) + b[None, :, None, None]

    def bn(y, gamma, beta):
        mu = jnp.mean(y, axis=(0, 2, 3), keepdims=True)
        var = jnp.mean((y - mu) ** 2, axis=(0, 2, 3), keepdims=True)
        return ((y - mu) / jnp.sqrt(var + EPS)
                * gamma[None, :, None, None] + beta[None, :, None, None])

    g1 = bn(conv1x1(g_nchw, params["wg"], params["bg"]),
            params["gamg"], params["betg"])
    x1 = bn(conv1x1(x_nchw, params["wx"], params["bx"]),
            params["gamx"], params["betx"])
    a = jnp.maximum(g1 + x1, 0.0)
    p = bn(conv1x1(a, params["wp"][None, :], params["bp"]),
           params["gamp"], params["betp"])
    psi = jax.nn.sigmoid(p)
    return x_nchw * psi


if __name__ == "__main__":
    # Small shapes consistent with the module: F_g = F_l = 4, F_int = 32.
    N, F_g, F_l, F_int, H, W = 2, 4, 4, 32, 16, 16

    key = jax.random.PRNGKey(0)
    kg, kx, kp = jax.random.split(key, 3)
    g = jax.random.normal(kg, (N, F_g, H, W), jnp.float32)
    x = jax.random.normal(kx, (N, F_l, H, W), jnp.float32)
    params = init_params(kp, F_g, F_l, F_int)

    out = jax.block_until_ready(attention_block(g, x, params))
    ref = reference(g, x, params)

    assert out.shape == x.shape and out.dtype == jnp.float32
    assert jnp.allclose(out, ref, atol=1e-4, rtol=1e-4), "mismatch vs JAX reference"
    print("KERNEL_OK")
</pallas_src>

<mosaic_0001>
module attributes {stable_mosaic.version = 11 : i64} {
  func.func @attention_block_kernel(%arg0: i32, %arg1: memref<8x512xf32, #tpu.memory_space<vmem>>, %arg2: memref<4x512xf32, #tpu.memory_space<vmem>>, %arg3: memref<64x8xf32, #tpu.memory_space<vmem>>, %arg4: memref<64x8xf32, #tpu.memory_space<vmem>>, %arg5: memref<4x512xf32, #tpu.memory_space<vmem>>) attributes {dimension_semantics = [#tpu.dimension_semantics<arbitrary>], iteration_bounds = array<i64: 1>, scalar_prefetch = 0 : i64, scratch_operands = 0 : i64, tpu.core_type = #tpu.core_type<tc>, window_params = [{pipeline_mode = #tpu.pipeline_mode<synchronous>, transform_indices = @transform_0, window_bounds = array<i64: 8, 512>}, {pipeline_mode = #tpu.pipeline_mode<synchronous>, transform_indices = @transform_1, window_bounds = array<i64: 4, 512>}, {pipeline_mode = #tpu.pipeline_mode<synchronous>, transform_indices = @transform_2, window_bounds = array<i64: 64, 8>}, {pipeline_mode = #tpu.pipeline_mode<synchronous>, transform_indices = @transform_3, window_bounds = array<i64: 64, 8>}, {pipeline_mode = #tpu.pipeline_mode<synchronous>, transform_indices = @transform_4, window_bounds = array<i64: 4, 512>}]} {
    %c0 = arith.constant 0 : index
    %c0_0 = arith.constant 0 : index
    %0 = vector.load %arg1[%c0, %c0_0] : memref<8x512xf32, #tpu.memory_space<vmem>>, vector<8x512xf32>
    %c0_1 = arith.constant 0 : index
    %c0_2 = arith.constant 0 : index
    %1 = vector.load %arg2[%c0_1, %c0_2] : memref<4x512xf32, #tpu.memory_space<vmem>>, vector<4x512xf32>
    %c0_3 = arith.constant 0 : index
    %c0_4 = arith.constant 0 : index
    %2 = vector.load %arg3[%c0_3, %c0_4] : memref<64x8xf32, #tpu.memory_space<vmem>>, vector<64x8xf32>
    %c0_5 = arith.constant 0 : index
    %c0_6 = arith.constant 0 : index
    %3 = vector.load %arg4[%c0_5, %c0_6] : memref<64x8xf32, #tpu.memory_space<vmem>>, vector<64x8xf32>
    %4 = vector.extract_strided_slice %3 {offsets = [0, 0], sizes = [64, 1], strides = [1, 1]} : vector<64x8xf32> to vector<64x1xf32>
    %5 = vector.extract_strided_slice %3 {offsets = [0, 1], sizes = [64, 1], strides = [1, 1]} : vector<64x8xf32> to vector<64x1xf32>
    %6 = vector.extract_strided_slice %3 {offsets = [0, 2], sizes = [64, 1], strides = [1, 1]} : vector<64x8xf32> to vector<64x1xf32>
    %7 = vector.extract_strided_slice %3 {offsets = [0, 3], sizes = [32, 1], strides = [1, 1]} : vector<64x8xf32> to vector<32x1xf32>
    %8 = vector.extract_strided_slice %3 {offsets = [0, 4], sizes = [1, 1], strides = [1, 1]} : vector<64x8xf32> to vector<1x1xf32>
    %9 = vector.extract_strided_slice %3 {offsets = [0, 5], sizes = [1, 1], strides = [1, 1]} : vector<64x8xf32> to vector<1x1xf32>
    %10 = vector.extract_strided_slice %3 {offsets = [0, 6], sizes = [1, 1], strides = [1, 1]} : vector<64x8xf32> to vector<1x1xf32>
    %cst = arith.constant dense<0.000000e+00> : vector<64x512xf32>
    %11 = tpu.matmul %2, %0, %cst {dimension_numbers = #tpu.dot_dimension_numbers<[1], [0], [0], [1], [0, 0, 1, 1], [], []>} : vector<64x8xf32>, vector<8x512xf32>, vector<64x512xf32> -> vector<64x512xf32>
    %12 = vector.broadcast %4 : vector<64x1xf32> to vector<64x512xf32>
    %13 = arith.addf %11, %12 : vector<64x512xf32>
    %cst_7 = arith.constant dense<0.000000e+00> : vector<64xf32>
    %14 = vector.multi_reduction <add>, %13, %cst_7 [1] : vector<64x512xf32> to vector<64xf32>
    %15 = vector.shape_cast %14 : vector<64xf32> to vector<64x1xf32>
    %cst_8 = arith.constant 0.001953125 : f32
    %16 = vector.broadcast %cst_8 : f32 to vector<64x1xf32>
    %17 = arith.mulf %15, %16 : vector<64x1xf32>
    %18 = arith.mulf %13, %13 : vector<64x512xf32>
    %cst_9 = arith.constant dense<0.000000e+00> : vector<64xf32>
    %19 = vector.multi_reduction <add>, %18, %cst_9 [1] : vector<64x512xf32> to vector<64xf32>
    %20 = vector.shape_cast %19 : vector<64xf32> to vector<64x1xf32>
    %cst_10 = arith.constant 0.001953125 : f32
    %21 = vector.broadcast %cst_10 : f32 to vector<64x1xf32>
    %22 = arith.mulf %20, %21 : vector<64x1xf32>
    %23 = arith.mulf %17, %17 : vector<64x1xf32>
    %24 = arith.subf %22, %23 : vector<64x1xf32>
    %25 = vector.broadcast %17 : vector<64x1xf32> to vector<64x512xf32>
    %26 = arith.subf %13, %25 : vector<64x512xf32>
    %cst_11 = arith.constant 9.99999974E-6 : f32
    %27 = vector.broadcast %cst_11 : f32 to vector<64x1xf32>
    %28 = arith.addf %24, %27 : vector<64x1xf32>
    %29 = math.rsqrt %28 : vector<64x1xf32>
    %30 = vector.broadcast %29 : vector<64x1xf32> to vector<64x512xf32>
    %31 = arith.mulf %26, %30 : vector<64x512xf32>
    %32 = vector.broadcast %5 : vector<64x1xf32> to vector<64x512xf32>
    %33 = arith.mulf %31, %32 : vector<64x512xf32>
    %34 = vector.broadcast %6 : vector<64x1xf32> to vector<64x512xf32>
    %35 = arith.addf %33, %34 : vector<64x512xf32>
    %36 = vector.extract_strided_slice %35 {offsets = [0, 0], sizes = [32, 512], strides = [1, 1]} : vector<64x512xf32> to vector<32x512xf32>
    %37 = vector.extract_strided_slice %35 {offsets = [32, 0], sizes = [32, 512], strides = [1, 1]} : vector<64x512xf32> to vector<32x512xf32>
    %38 = arith.addf %36, %37 : vector<32x512xf32>
    %cst_12 = arith.constant 0.000000e+00 : f32
    %39 = vector.broadcast %cst_12 : f32 to vector<32x512xf32>
    %40 = arith.maximumf %38, %39 : vector<32x512xf32>
    %41 = vector.broadcast %7 : vector<32x1xf32> to vector<32x512xf32>
    %42 = arith.mulf %41, %40 : vector<32x512xf32>
    %cst_13 = arith.constant dense<0.000000e+00> : vector<512xf32>
    %43 = vector.multi_reduction <add>, %42, %cst_13 [0] : vector<32x512xf32> to vector<512xf32>
    %44 = vector.shape_cast %43 : vector<512xf32> to vector<1x512xf32>
    %45 = vector.broadcast %8 : vector<1x1xf32> to vector<1x512xf32>
    %46 = arith.addf %44, %45 : vector<1x512xf32>
    %cst_14 = arith.constant dense<0.000000e+00> : vector<1xf32>
    %47 = vector.multi_reduction <add>, %46, %cst_14 [1] : vector<1x512xf32> to vector<1xf32>
    %48 = vector.shape_cast %47 : vector<1xf32> to vector<1x1xf32>
    %cst_15 = arith.constant 0.001953125 : f32
    %49 = vector.broadcast %cst_15 : f32 to vector<1x1xf32>
    %50 = arith.mulf %48, %49 : vector<1x1xf32>
    %51 = arith.mulf %46, %46 : vector<1x512xf32>
    %cst_16 = arith.constant dense<0.000000e+00> : vector<1xf32>
    %52 = vector.multi_reduction <add>, %51, %cst_16 [1] : vector<1x512xf32> to vector<1xf32>
    %53 = vector.shape_cast %52 : vector<1xf32> to vector<1x1xf32>
    %cst_17 = arith.constant 0.001953125 : f32
    %54 = vector.broadcast %cst_17 : f32 to vector<1x1xf32>
    %55 = arith.mulf %53, %54 : vector<1x1xf32>
    %56 = arith.mulf %50, %50 : vector<1x1xf32>
    %57 = arith.subf %55, %56 : vector<1x1xf32>
    %58 = vector.broadcast %50 : vector<1x1xf32> to vector<1x512xf32>
    %59 = arith.subf %46, %58 : vector<1x512xf32>
    %cst_18 = arith.constant 9.99999974E-6 : f32
    %60 = vector.broadcast %cst_18 : f32 to vector<1x1xf32>
    %61 = arith.addf %57, %60 : vector<1x1xf32>
    %62 = math.rsqrt %61 : vector<1x1xf32>
    %63 = vector.broadcast %62 : vector<1x1xf32> to vector<1x512xf32>
    %64 = arith.mulf %59, %63 : vector<1x512xf32>
    %65 = vector.broadcast %9 : vector<1x1xf32> to vector<1x512xf32>
    %66 = arith.mulf %64, %65 : vector<1x512xf32>
    %67 = vector.broadcast %10 : vector<1x1xf32> to vector<1x512xf32>
    %68 = arith.addf %66, %67 : vector<1x512xf32>
    %69 = arith.negf %68 : vector<1x512xf32>
    %70 = math.exp %69 : vector<1x512xf32>
    %cst_19 = arith.constant 1.000000e+00 : f32
    %71 = vector.broadcast %cst_19 : f32 to vector<1x512xf32>
    %72 = arith.addf %71, %70 : vector<1x512xf32>
    %73 = arith.divf %71, %72 : vector<1x512xf32>
    %74 = vector.broadcast %73 : vector<1x512xf32> to vector<4x512xf32>
    %75 = arith.mulf %1, %74 : vector<4x512xf32>
    %c0_20 = arith.constant 0 : index
    %c0_21 = arith.constant 0 : index
    %76 = vector.load %arg5[%c0_20, %c0_21] : memref<4x512xf32, #tpu.memory_space<vmem>>, vector<4x512xf32>
    tpu.vector_store %arg5[%c0_20, %c0_21], %75 {strides = array<i32>} : memref<4x512xf32, #tpu.memory_space<vmem>>, vector<4x512xf32>,
    return
  }
  func.func @transform_0(%arg0: i32) -> (i32, i32) {
    %c0_i32 = arith.constant 0 : i32
    %c0_i32_0 = arith.constant 0 : i32
    %c0_i32_1 = arith.constant 0 : i32
    return %c0_i32, %c0_i32_0 : i32, i32
  }
  func.func @transform_1(%arg0: i32) -> (i32, i32) {
    %c0_i32 = arith.constant 0 : i32
    %c0_i32_0 = arith.constant 0 : i32
    %c0_i32_1 = arith.constant 0 : i32
    return %c0_i32, %c0_i32_0 : i32, i32
  }
  func.func @transform_2(%arg0: i32) -> (i32, i32) {
    %c0_i32 = arith.constant 0 : i32
    %c0_i32_0 = arith.constant 0 : i32
    %c0_i32_1 = arith.constant 0 : i32
    return %c0_i32, %c0_i32_0 : i32, i32
  }
  func.func @transform_3(%arg0: i32) -> (i32, i32) {
    %c0_i32 = arith.constant 0 : i32
    %c0_i32_0 = arith.constant 0 : i32
    %c0_i32_1 = arith.constant 0 : i32
    return %c0_i32, %c0_i32_0 : i32, i32
  }
  func.func @transform_4(%arg0: i32) -> (i32, i32) {
    %c0_i32 = arith.constant 0 : i32
    %c0_i32_0 = arith.constant 0 : i32
    %c0_i32_1 = arith.constant 0 : i32
    return %c0_i32, %c0_i32_0 : i32, i32
  }
}

</mosaic_0001>

<llo_original>
// kernel: tpu_custom_call.1
$region0: #{tpu_custom_call.1}
  #allocation0 [shape = 'u32[]', space=smem, size = 0x4, offset = 0x4, fixed_abs, tag = 'smem constant byte address 0x4 - core index']
  #allocation1 [shape = 'u32[144,128]{1,0:T(1,128)}', space=vmem, size = 0x12000, scoped, tag = 'internal scratch']
  %s0 = inlined_call_operand.vmem [shape: f32[8,512], index: 0, kind: input, shape index: {}]
  %s1 = inlined_call_operand.hbm [shape: f32[4,512], index: 1, kind: input, shape index: {}, may-alias: {1,4}]
  %s2 = inlined_call_operand.vmem [shape: f32[64,8], index: 2, kind: input, shape index: {}]
  %s3 = inlined_call_operand.vmem [shape: f32[64,8], index: 3, kind: input, shape index: {}]
  %s4 = inlined_call_operand.hbm [shape: f32[4,512], index: 4, kind: output, shape index: {}, may-alias: {1,4}]
  %s5 = sld [smem:[#allocation0]]
  $region30: #{tpu_custom_call.1} parent=0
    _
  %s7 = ssub.s32 1, %s5
  %s8 = scalar_select 0, %s7, %s5
  $region1: #{tpu_custom_call.1} parent=0
    #allocation2 [shape = 'u8[8192]{0}', space=vmem, size = 0x2000, scoped, tag = 'input window, operand 1, single buffered']
    #allocation3 [shape = 's32[1]{0}', space=sflag, size = 0x4, scoped, tag = 'scoped memory for tpu_custom_call.1']
    #allocation4 [shape = 's32[1]{0}', space=sflag, size = 0x4, scoped, tag = 'scoped memory for tpu_custom_call.1']
    #allocation5 [shape = 'u8[8192]{0}', space=vmem, size = 0x2000, scoped, tag = 'output window, operand 0, single buffered']
    %9 = vsyncpa [#allocation3], 0
    %10 = vsyncpa [#allocation4], 0
    // Predicated region
    $region2: #{tpu_custom_call.1} parent=1 // pred_check
      _
    $region3: #{tpu_custom_call.1} parent=1 // pred_check_branch
      %12 = sbr.rel (0) target = $region5
    $region4: #{tpu_custom_call.1} parent=1 // pred_region
      _
    $region5: #{tpu_custom_call.1} parent=1 // pred_fallthru
      _
    // Predicated region
    $region6: #{tpu_custom_call.1} parent=1 // pred_check
      _
    $region7: #{tpu_custom_call.1} parent=1 // pred_check_branch
      %14 = sbr.rel (0) target = $region9
    $region8: #{tpu_custom_call.1} parent=1 // pred_region
      %s16 = ssub.s32 256, 256
      %17 = vsyncadd [#allocation3], %s16
      %s19 = sshll.u32 [#allocation2], 4
      %s20 = int_to_ptr.vmem [resolvable:$true] %s19
      %22 = dma.hbm_to_vmem [thread:$0]  %s1, 256, %s20, [#allocation3]
    $region9: #{tpu_custom_call.1} parent=1 // pred_fallthru
      _
    // Predicated region
    $region10: #{tpu_custom_call.1} parent=1 // pred_check
      _
    $region11: #{tpu_custom_call.1} parent=1 // pred_check_branch
      %24 = sbr.rel (0) target = $region13
    $region12: #{tpu_custom_call.1} parent=1 // pred_region
      _
    $region13: #{tpu_custom_call.1} parent=1 // pred_fallthru
      _
    // Predicated region
    $region14: #{tpu_custom_call.1} parent=1 // pred_check
      _
    $region15: #{tpu_custom_call.1} parent=1 // pred_check_branch
      %26 = sbr.rel (0) target = $region17
    $region16: #{tpu_custom_call.1} parent=1 // pred_region
      _
    $region17: #{tpu_custom_call.1} parent=1 // pred_fallthru
      _
    // Predicated region
    $region18: #{tpu_custom_call.1} parent=1 // pred_check
      _
    $region19: #{tpu_custom_call.1} parent=1 // pred_check_branch
      %28 = sbr.rel (0) target = $region21
    $region20: #{tpu_custom_call.1} parent=1 // pred_region
      %29 = dma.done [#allocation3], 256
    $region21: #{tpu_custom_call.1} parent=1 // pred_fallthru
      _
    %v30 = vld [vmem:[%s0] sm:$0xff]
    %v31 = vld [vmem:[%s0 + $0x8] sm:$0xff]
    %v32 = vld [vmem:[%s0 + $0x10] sm:$0xff]
    %v33 = vld [vmem:[%s0 + $0x18] sm:$0xff]
    %v34 = vld [vmem:[#allocation2] sm:$0xff]
    %v35 = vld [vmem:[#allocation2 + $0x8] sm:$0xff]
    %v36 = vld [vmem:[%s2] sm:$0xff]
    %v37 = vld [vmem:[%s2 + $0x8] sm:$0xff]
    %v38 = vld [vmem:[%s2 + $0x10] sm:$0xff]
    %v39 = vld [vmem:[%s2 + $0x18] sm:$0xff]
    %v40 = vld [vmem:[%s2 + $0x20] sm:$0xff]
    %v41 = vld [vmem:[%s2 + $0x28] sm:$0xff]
    %v42 = vld [vmem:[%s2 + $0x30] sm:$0xff]
    %v43 = vld [vmem:[%s2 + $0x38] sm:$0xff]
    %v44 = vld [vmem:[%s3] sm:$0xff]
    %v45 = vld [vmem:[%s3 + $0x8] sm:$0xff]
    %v46 = vld [vmem:[%s3 + $0x10] sm:$0xff]
    %v47 = vld [vmem:[%s3 + $0x18] sm:$0xff]
    %v48 = vld [vmem:[%s3 + $0x20] sm:$0xff]
    %v49 = vld [vmem:[%s3 + $0x28] sm:$0xff]
    %v50 = vld [vmem:[%s3 + $0x30] sm:$0xff]
    %v51 = vld [vmem:[%s3 + $0x38] sm:$0xff]
    %53 = vset.pattern.permute.xlu0 0
    %54 = vperm.xlu0 %53, %v44
    %v55 = vpop.permute.xlu0 %54
    %58 = vset.pattern.permute.xlu0 0
    %59 = vperm.xlu0 %58, %v45
    %v60 = vpop.permute.xlu0 %59
    %63 = vset.pattern.permute.xlu0 0
    %64 = vperm.xlu0 %63, %v46
    %v65 = vpop.permute.xlu0 %64
    %68 = vset.pattern.permute.xlu0 0
    %69 = vperm.xlu0 %68, %v47
    %v70 = vpop.permute.xlu0 %69
    %73 = vset.pattern.permute.xlu0 0
    %74 = vperm.xlu0 %73, %v48
    %v75 = vpop.permute.xlu0 %74
    %78 = vset.pattern.permute.xlu0 0
    %79 = vperm.xlu0 %78, %v49
    %v80 = vpop.permute.xlu0 %79
    %83 = vset.pattern.permute.xlu0 0
    %84 = vperm.xlu0 %83, %v50
    %v85 = vpop.permute.xlu0 %84
    %88 = vset.pattern.permute.xlu0 0
    %89 = vperm.xlu0 %88, %v51
    %v90 = vpop.permute.xlu0 %89
    %vm92 = vcmask 64512
    %v94 = vsel %vm92, %v36, 0
    %v97 = vsel %vm92, %v37, 0
    %v100 = vsel %vm92, %v38, 0
    %v103 = vsel %vm92, %v39, 0
    %v106 = vsel %vm92, %v40, 0
    %v109 = vsel %vm92, %v41, 0
    %v112 = vsel %vm92, %v42, 0
    %v115 = vsel %vm92, %v43, 0
    %117 = vmatprep.subr.mxu0 %v31
    %118 = vmatpush1.msra.mxu0 %v30
    %119 = vmatprep.subr.mxu0 0.0
    %120 = vmatpush1.msra.mxu0 0.0
    %121 = vmatprep.subr.mxu0 0.0
    %122 = vmatpush1.msra.mxu0 0.0
    %123 = vmatprep.subr.mxu0 0.0
    %124 = vmatpush1.msra.mxu0 0.0
    %125 = vmatprep.subr.mxu0 0.0
    %126 = vmatpush1.msra.mxu0 0.0
    %127 = vmatprep.subr.mxu0 0.0
    %128 = vmatpush1.msra.mxu0 0.0
    %129 = vmatprep.subr.mxu0 0.0
    %130 = vmatpush1.msra.mxu0 0.0
    %131 = vmatprep.subr.mxu0 0.0
    %132 = vmatpush1.msra.mxu0 0.0
    %133 = vmatprep.subr.mxu0 0.0
    %134 = vmatpush1.msra.mxu0 0.0
    %135 = vmatprep.subr.mxu0 0.0
    %136 = vmatpush1.msra.mxu0 0.0
    %137 = vmatprep.subr.mxu0 0.0
    %138 = vmatpush1.msra.mxu0 0.0
    %139 = vmatprep.subr.mxu0 0.0
    %140 = vmatpush1.msra.mxu0 0.0
    %141 = vmatprep.subr.mxu0 0.0
    %142 = vmatpush1.msra.mxu0 0.0
    %143 = vmatprep.subr.mxu0 0.0
    %144 = vmatpush1.msra.mxu0 0.0
    %145 = vmatprep.subr.mxu0 0.0
    %146 = vmatpush1.msra.mxu0 0.0
    %147 = vmatprep.subr.mxu0 0.0
    %148 = vmatpush1.msra.mxu0 0.0
    %149 = vmatprep.subr.mxu0 0.0
    %150 = vmatpush1.msra.mxu0 0.0
    %151 = vmatprep.subr.mxu0 0.0
    %152 = vmatpush1.msra.mxu0 0.0
    %153 = vmatprep.subr.mxu0 0.0
    %154 = vmatpush1.msra.mxu0 0.0
    %155 = vmatprep.subr.mxu0 0.0
    %156 = vmatpush1.msra.mxu0 0.0
    %157 = vmatprep.subr.mxu0 0.0
    %158 = vmatpush1.msra.mxu0 0.0
    %159 = vmatprep.subr.mxu0 0.0
    %160 = vmatpush1.msra.mxu0 0.0
    %161 = vmatprep.subr.mxu0 0.0
    %162 = vmatpush1.msra.mxu0 0.0
    %163 = vmatprep.subr.mxu0 0.0
    %164 = vmatpush1.msra.mxu0 0.0
    %165 = vmatprep.subr.mxu0 0.0
    %166 = vmatpush1.msra.mxu0 0.0
    %167 = vmatprep.subr.mxu0 0.0
    %168 = vmatpush1.msra.mxu0 0.0
    %169 = vmatprep.subr.mxu0 0.0
    %170 = vmatpush1.msra.mxu0 0.0
    %171 = vmatprep.subr.mxu0 0.0
    %172 = vmatpush1.msra.mxu0 0.0
    %173 = vmatprep.subr.mxu0 0.0
    %174 = vmatpush1.msra.mxu0 0.0
    %175 = vmatprep.subr.mxu0 0.0
    %176 = vmatpush1.msra.mxu0 0.0
    %177 = vmatprep.subr.mxu0 0.0
    %178 = vmatpush1.msra.mxu0 0.0
    %179 = vmatprep.subr.mxu0 0.0
    %180 = vmatpush1.msra.mxu0 0.0
    %181 = vmatprep.mubr.f32.mxu0 0.0
    %182 = vmatmul.mubr.f32.gmra.mrb[0].mxu0 %v94
    %v183 = vpop.f32.mrb[0].mxu0
    %v184 = vadd.f32 %v55, %v183
    %v185 = vpop.f32.mrb[0].mxu0
    %v186 = vadd.f32 %v55, %v185
    %187 = vmatprep.mubr.f32.mxu0 0.0
    %188 = vmatmul.mubr.f32.gmra.mrb[0].mxu0 %v97
    %v189 = vpop.f32.mrb[0].mxu0
    %v190 = vadd.f32 %v60, %v189
    %v191 = vpop.f32.mrb[0].mxu0
    %v192 = vadd.f32 %v60, %v191
    %193 = vmatprep.mubr.f32.mxu0 0.0
    %194 = vmatmul.mubr.f32.gmra.mrb[0].mxu0 %v100
    %v195 = vpop.f32.mrb[0].mxu0
    %v196 = vadd.f32 %v65, %v195
    %v197 = vpop.f32.mrb[0].mxu0
    %v198 = vadd.f32 %v65, %v197
    %199 = vmatprep.mubr.f32.mxu0 0.0
    %200 = vmatmul.mubr.f32.gmra.mrb[0].mxu0 %v103
    %v201 = vpop.f32.mrb[0].mxu0
    %v202 = vadd.f32 %v70, %v201
    %v203 = vpop.f32.mrb[0].mxu0
    %v204 = vadd.f32 %v70, %v203
    %205 = vmatprep.mubr.f32.mxu0 0.0
    %206 = vmatmul.mubr.f32.gmra.mrb[0].mxu0 %v106
    %v207 = vpop.f32.mrb[0].mxu0
    %v208 = vadd.f32 %v75, %v207
    %v209 = vpop.f32.mrb[0].mxu0
    %v210 = vadd.f32 %v75, %v209
    %211 = vmatprep.mubr.f32.mxu0 0.0
    %212 = vmatmul.mubr.f32.gmra.mrb[0].mxu0 %v109
    %v213 = vpop.f32.mrb[0].mxu0
    %v214 = vadd.f32 %v80, %v213
    %v215 = vpop.f32.mrb[0].mxu0
    %v216 = vadd.f32 %v80, %v215
    %217 = vmatprep.mubr.f32.mxu0 0.0
    %218 = vmatmul.mubr.f32.gmra.mrb[0].mxu0 %v112
    %v219 = vpop.f32.mrb[0].mxu0
    %v220 = vadd.f32 %v85, %v219
    %v221 = vpop.f32.mrb[0].mxu0
    %v222 = vadd.f32 %v85, %v221
    %223 = vmatprep.mubr.f32.mxu0 0.0
    %224 = vmatmul.mubr.f32.gmra.mrb[0].mxu0 %v115
    %v225 = vpop.f32.mrb[0].mxu0
    %v226 = vadd.f32 %v90, %v225
    %v227 = vpop.f32.mrb[0].mxu0
    %v228 = vadd.f32 %v90, %v227
    %229 = vdwg.mxu0
    %230 = vmatprep.subr.mxu0 %v33
    %231 = vmatpush1.msra.mxu0 %v32
    %232 = vmatprep.subr.mxu0 0.0
    %233 = vmatpush1.msra.mxu0 0.0
    %234 = vmatprep.subr.mxu0 0.0
    %235 = vmatpush1.msra.mxu0 0.0
    %236 = vmatprep.subr.mxu0 0.0
    %237 = vmatpush1.msra.mxu0 0.0
    %238 = vmatprep.subr.mxu0 0.0
    %239 = vmatpush1.msra.mxu0 0.0
    %240 = vmatprep.subr.mxu0 0.0
    %241 = vmatpush1.msra.mxu0 0.0
    %242 = vmatprep.subr.mxu0 0.0
    %243 = vmatpush1.msra.mxu0 0.0
    %244 = vmatprep.subr.mxu0 0.0
    %245 = vmatpush1.msra.mxu0 0.0
    %246 = vmatprep.subr.mxu0 0.0
    %247 = vmatpush1.msra.mxu0 0.0
    %248 = vmatprep.subr.mxu0 0.0
    %249 = vmatpush1.msra.mxu0 0.0
    %250 = vmatprep.subr.mxu0 0.0
    %251 = vmatpush1.msra.mxu0 0.0
    %252 = vmatprep.subr.mxu0 0.0
    %253 = vmatpush1.msra.mxu0 0.0
    %254 = vmatprep.subr.mxu0 0.0
    %255 = vmatpush1.msra.mxu0 0.0
    %256 = vmatprep.subr.mxu0 0.0
    %257 = vmatpush1.msra.mxu0 0.0
    %258 = vmatprep.subr.mxu0 0.0
    %259 = vmatpush1.msra.mxu0 0.0
    %260 = vmatprep.subr.mxu0 0.0
    %261 = vmatpush1.msra.mxu0 0.0
    %262 = vmatprep.subr.mxu0 0.0
    %263 = vmatpush1.msra.mxu0 0.0
    %264 = vmatprep.subr.mxu0 0.0
    %265 = vmatpush1.msra.mxu0 0.0
    %266 = vmatprep.subr.mxu0 0.0
    %267 = vmatpush1.msra.mxu0 0.0
    %268 = vmatprep.subr.mxu0 0.0
    %269 = vmatpush1.msra.mxu0 0.0
    %270 = vmatprep.subr.mxu0 0.0
    %271 = vmatpush1.msra.mxu0 0.0
    %272 = vmatprep.subr.mxu0 0.0
    %273 = vmatpush1.msra.mxu0 0.0
    %274 = vmatprep.subr.mxu0 0.0
    %275 = vmatpush1.msra.mxu0 0.0
    %276 = vmatprep.subr.mxu0 0.0
    %277 = vmatpush1.msra.mxu0 0.0
    %278 = vmatprep.subr.mxu0 0.0
    %279 = vmatpush1.msra.mxu0 0.0
    %280 = vmatprep.subr.mxu0 0.0
    %281 = vmatpush1.msra.mxu0 0.0
    %282 = vmatprep.subr.mxu0 0.0
    %283 = vmatpush1.msra.mxu0 0.0
    %284 = vmatprep.subr.mxu0 0.0
    %285 = vmatpush1.msra.mxu0 0.0
    %286 = vmatprep.subr.mxu0 0.0
    %287 = vmatpush1.msra.mxu0 0.0
    %288 = vmatprep.subr.mxu0 0.0
    %289 = vmatpush1.msra.mxu0 0.0
    %290 = vmatprep.subr.mxu0 0.0
    %291 = vmatpush1.msra.mxu0 0.0
    %292 = vmatprep.subr.mxu0 0.0
    %293 = vmatpush1.msra.mxu0 0.0
    %294 = vmatprep.mubr.f32.mxu0 0.0
    %295 = vmatmul.mubr.f32.gmra.mrb[0].mxu0 %v94
    %v296 = vpop.f32.mrb[0].mxu0
    %v297 = vadd.f32 %v55, %v296
    %v298 = vpop.f32.mrb[0].mxu0
    %v299 = vadd.f32 %v55, %v298
    %300 = vmatprep.mubr.f32.mxu0 0.0
    %301 = vmatmul.mubr.f32.gmra.mrb[0].mxu0 %v97
    %v302 = vpop.f32.mrb[0].mxu0
    %v303 = vadd.f32 %v60, %v302
    %v304 = vpop.f32.mrb[0].mxu0
    %v305 = vadd.f32 %v60, %v304
    %306 = vmatprep.mubr.f32.mxu0 0.0
    %307 = vmatmul.mubr.f32.gmra.mrb[0].mxu0 %v100
    %v308 = vpop.f32.mrb[0].mxu0
    %v309 = vadd.f32 %v65, %v308
    %v310 = vpop.f32.mrb[0].mxu0
    %v311 = vadd.f32 %v65, %v310
    %312 = vmatprep.mubr.f32.mxu0 0.0
    %313 = vmatmul.mubr.f32.gmra.mrb[0].mxu0 %v103
    %v314 = vpop.f32.mrb[0].mxu0
    %v315 = vadd.f32 %v70, %v314
    %v316 = vpop.f32.mrb[0].mxu0
    %v317 = vadd.f32 %v70, %v316
    %318 = vmatprep.mubr.f32.mxu0 0.0
    %319 = vmatmul.mubr.f32.gmra.mrb[0].mxu0 %v106
    %v320 = vpop.f32.mrb[0].mxu0
    %v321 = vadd.f32 %v75, %v320
    %v322 = vpop.f32.mrb[0].mxu0
    %v323 = vadd.f32 %v75, %v322
    %324 = vmatprep.mubr.f32.mxu0 0.0
    %325 = vmatmul.mubr.f32.gmra.mrb[0].mxu0 %v109
    %v326 = vpop.f32.mrb[0].mxu0
    %v327 = vadd.f32 %v80, %v326
    %v328 = vpop.f32.mrb[0].mxu0
    %v329 = vadd.f32 %v80, %v328
    %330 = vmatprep.mubr.f32.mxu0 0.0
    %331 = vmatmul.mubr.f32.gmra.mrb[0].mxu0 %v112
    %v332 = vpop.f32.mrb[0].mxu0
    %v333 = vadd.f32 %v85, %v332
    %v334 = vpop.f32.mrb[0].mxu0
    %v335 = vadd.f32 %v85, %v334
    %336 = vmatprep.mubr.f32.mxu0 0.0
    %337 = vmatmul.mubr.f32.gmra.mrb[0].mxu0 %v115
    %v338 = vpop.f32.mrb[0].mxu0
    %v339 = vadd.f32 %v90, %v338
    %v340 = vpop.f32.mrb[0].mxu0
    %v341 = vadd.f32 %v90, %v340
    %342 = vdwg.mxu0
    %v343 = vadd.f32 %v184, %v186
    %v344 = vadd.f32 %v343, %v297
    %v345 = vadd.f32 %v344, %v299
    %346 = vadd.xlane.f32.xlu0 %v345
    %v347 = vpop.xlane.xlu0 %346
    %v348 = vadd.f32 %v190, %v192
    %v349 = vadd.f32 %v348, %v303
    %v350 = vadd.f32 %v349, %v305
    %351 = vadd.xlane.f32.xlu0 %v350
    %v352 = vpop.xlane.xlu0 %351
    %v353 = vadd.f32 %v196, %v198
    %v354 = vadd.f32 %v353, %v309
    %v355 = vadd.f32 %v354, %v311
    %356 = vadd.xlane.f32.xlu0 %v355
    %v357 = vpop.xlane.xlu0 %356
    %v358 = vadd.f32 %v202, %v204
    %v359 = vadd.f32 %v358, %v315
    %v360 = vadd.f32 %v359, %v317
    %361 = vadd.xlane.f32.xlu0 %v360
    %v362 = vpop.xlane.xlu0 %361
    %v363 = vadd.f32 %v208, %v210
    %v364 = vadd.f32 %v363, %v321
    %v365 = vadd.f32 %v364, %v323
    %366 = vadd.xlane.f32.xlu0 %v365
    %v367 = vpop.xlane.xlu0 %366
    %v368 = vadd.f32 %v214, %v216
    %v369 = vadd.f32 %v368, %v327
    %v370 = vadd.f32 %v369, %v329
    %371 = vadd.xlane.f32.xlu0 %v370
    %v372 = vpop.xlane.xlu0 %371
    %v373 = vadd.f32 %v220, %v222
    %v374 = vadd.f32 %v373, %v333
    %v375 = vadd.f32 %v374, %v335
    %376 = vadd.xlane.f32.xlu0 %v375
    %v377 = vpop.xlane.xlu0 %376
    %v378 = vadd.f32 %v226, %v228
    %v379 = vadd.f32 %v378, %v339
    %v380 = vadd.f32 %v379, %v341
    %381 = vadd.xlane.f32.xlu0 %v380
    %v382 = vpop.xlane.xlu0 %381
    %v383 = vmul.f32 %v347, 0.001953125
    %v384 = vmul.f32 %v352, 0.001953125
    %v385 = vmul.f32 %v357, 0.001953125
    %v386 = vmul.f32 %v362, 0.001953125
    %v387 = vmul.f32 %v367, 0.001953125
    %v388 = vmul.f32 %v372, 0.001953125
    %v389 = vmul.f32 %v377, 0.001953125
    %v390 = vmul.f32 %v382, 0.001953125
    %v391 = vmul.f32 %v184, %v184
    %v392 = vmul.f32 %v186, %v186
    %v393 = vmul.f32 %v297, %v297
    %v394 = vmul.f32 %v299, %v299
    %v395 = vmul.f32 %v190, %v190
    %v396 = vmul.f32 %v192, %v192
    %v397 = vmul.f32 %v303, %v303
    %v398 = vmul.f32 %v305, %v305
    %v399 = vmul.f32 %v196, %v196
    %v400 = vmul.f32 %v198, %v198
    %v401 = vmul.f32 %v309, %v309
    %v402 = vmul.f32 %v311, %v311
    %v403 = vmul.f32 %v202, %v202
    %v404 = vmul.f32 %v204, %v204
    %v405 = vmul.f32 %v315, %v315
    %v406 = vmul.f32 %v317, %v317
    %v407 = vmul.f32 %v208, %v208
    %v408 = vmul.f32 %v210, %v210
    %v409 = vmul.f32 %v321, %v321
    %v410 = vmul.f32 %v323, %v323
    %v411 = vmul.f32 %v214, %v214
    %v412 = vmul.f32 %v216, %v216
    %v413 = vmul.f32 %v327, %v327
    %v414 = vmul.f32 %v329, %v329
    %v415 = vmul.f32 %v220, %v220
    %v416 = vmul.f32 %v222, %v222
    %v417 = vmul.f32 %v333, %v333
    %v418 = vmul.f32 %v335, %v335
    %v419 = vmul.f32 %v226, %v226
    %v420 = vmul.f32 %v228, %v228
    %v421 = vmul.f32 %v339, %v339
    %v422 = vmul.f32 %v341, %v341
    %v423 = vadd.f32 %v391, %v392
    %v424 = vadd.f32 %v423, %v393
    %v425 = vadd.f32 %v424, %v394
    %426 = vadd.xlane.f32.xlu0 %v425
    %v427 = vpop.xlane.xlu0 %426
    %v428 = vadd.f32 %v395, %v396
    %v429 = vadd.f32 %v428, %v397
    %v430 = vadd.f32 %v429, %v398
    %431 = vadd.xlane.f32.xlu0 %v430
    %v432 = vpop.xlane.xlu0 %431
    %v433 = vadd.f32 %v399, %v400
    %v434 = vadd.f32 %v433, %v401
    %v435 = vadd.f32 %v434, %v402
    %436 = vadd.xlane.f32.xlu0 %v435
    %v437 = vpop.xlane.xlu0 %436
    %v438 = vadd.f32 %v403, %v404
    %v439 = vadd.f32 %v438, %v405
    %v440 = vadd.f32 %v439, %v406
    %441 = vadd.xlane.f32.xlu0 %v440
    %v442 = vpop.xlane.xlu0 %441
    %v443 = vadd.f32 %v407, %v408
    %v444 = vadd.f32 %v443, %v409
    %v445 = vadd.f32 %v444, %v410
    %446 = vadd.xlane.f32.xlu0 %v445
    %v447 = vpop.xlane.xlu0 %446
    %v448 = vadd.f32 %v411, %v412
    %v449 = vadd.f32 %v448, %v413
    %v450 = vadd.f32 %v449, %v414
    %451 = vadd.xlane.f32.xlu0 %v450
    %v452 = vpop.xlane.xlu0 %451
    %v453 = vadd.f32 %v415, %v416
    %v454 = vadd.f32 %v453, %v417
    %v455 = vadd.f32 %v454, %v418
    %456 = vadd.xlane.f32.xlu0 %v455
    %v457 = vpop.xlane.xlu0 %456
    %v458 = vadd.f32 %v419, %v420
    %v459 = vadd.f32 %v458, %v421
    %v460 = vadd.f32 %v459, %v422
    %461 = vadd.xlane.f32.xlu0 %v460
    %v462 = vpop.xlane.xlu0 %461
    %v463 = vmul.f32 %v427, 0.001953125
    %v464 = vmul.f32 %v432, 0.001953125
    %v465 = vmul.f32 %v437, 0.001953125
    %v466 = vmul.f32 %v442, 0.001953125
    %v467 = vmul.f32 %v447, 0.001953125
    %v468 = vmul.f32 %v452, 0.001953125
    %v469 = vmul.f32 %v457, 0.001953125
    %v470 = vmul.f32 %v462, 0.001953125
    %v471 = vmul.f32 %v383, %v383
    %v472 = vmul.f32 %v384, %v384
    %v473 = vmul.f32 %v385, %v385
    %v474 = vmul.f32 %v386, %v386
    %v475 = vmul.f32 %v387, %v387
    %v476 = vmul.f32 %v388, %v388
    %v477 = vmul.f32 %v389, %v389
    %v478 = vmul.f32 %v390, %v390
    %v479 = vsub.f32 %v463, %v471
    %v480 = vsub.f32 %v464, %v472
    %v481 = vsub.f32 %v465, %v473
    %v482 = vsub.f32 %v466, %v474
    %v483 = vsub.f32 %v467, %v475
    %v484 = vsub.f32 %v468, %v476
    %v485 = vsub.f32 %v469, %v477
    %v486 = vsub.f32 %v470, %v478
    %v487 = vsub.f32 %v184, %v383
    %v488 = vsub.f32 %v186, %v383
    %v489 = vsub.f32 %v297, %v383
    %v490 = vsub.f32 %v299, %v383
    %v491 = vsub.f32 %v190, %v384
    %v492 = vsub.f32 %v192, %v384
    %v493 = vsub.f32 %v303, %v384
    %v494 = vsub.f32 %v305, %v384
    %v495 = vsub.f32 %v196, %v385
    %v496 = vsub.f32 %v198, %v385
    %v497 = vsub.f32 %v309, %v385
    %v498 = vsub.f32 %v311, %v385
    %v499 = vsub.f32 %v202, %v386
    %v500 = vsub.f32 %v204, %v386
    %v501 = vsub.f32 %v315, %v386
    %v502 = vsub.f32 %v317, %v386
    %v503 = vsub.f32 %v208, %v387
    %v504 = vsub.f32 %v210, %v387
    %v505 = vsub.f32 %v321, %v387
    %v506 = vsub.f32 %v323, %v387
    %v507 = vsub.f32 %v214, %v388
    %v508 = vsub.f32 %v216, %v388
    %v509 = vsub.f32 %v327, %v388
    %v510 = vsub.f32 %v329, %v388
    %v511 = vsub.f32 %v220, %v389
    %v512 = vsub.f32 %v222, %v389
    %v513 = vsub.f32 %v333, %v389
    %v514 = vsub.f32 %v335, %v389
    %v515 = vsub.f32 %v226, %v390
    %v516 = vsub.f32 %v228, %v390
    %v517 = vsub.f32 %v339, %v390
    %v518 = vsub.f32 %v341, %v390
    %v519 = vadd.f32 %v479, 1e-05
    %v520 = vadd.f32 %v480, 1e-05
    %v521 = vadd.f32 %v481, 1e-05
    %v522 = vadd.f32 %v482, 1e-05
    %v523 = vadd.f32 %v483, 1e-05
    %v524 = vadd.f32 %v484, 1e-05
    %v525 = vadd.f32 %v485, 1e-05
    %v526 = vadd.f32 %v486, 1e-05
    %v527 = vrsqrt.pop %v519
    %v528 = vrsqrt.pop %v520
    %v529 = vrsqrt.pop %v521
    %v530 = vrsqrt.pop %v522
    %v531 = vrsqrt.pop %v523
    %v532 = vrsqrt.pop %v524
    %v533 = vrsqrt.pop %v525
    %v534 = vrsqrt.pop %v526
    %v535 = vmul.f32 %v487, %v527
    %v536 = vmul.f32 %v488, %v527
    %v537 = vmul.f32 %v489, %v527
    %v538 = vmul.f32 %v490, %v527
    %v539 = vmul.f32 %v491, %v528
    %v540 = vmul.f32 %v492, %v528
    %v541 = vmul.f32 %v493, %v528
    %v542 = vmul.f32 %v494, %v528
    %v543 = vmul.f32 %v495, %v529
    %v544 = vmul.f32 %v496, %v529
    %v545 = vmul.f32 %v497, %v529
    %v546 = vmul.f32 %v498, %v529
    %v547 = vmul.f32 %v499, %v530
    %v548 = vmul.f32 %v500, %v530
    %v549 = vmul.f32 %v501, %v530
    %v550 = vmul.f32 %v502, %v530
    %v551 = vmul.f32 %v503, %v531
    %v552 = vmul.f32 %v504, %v531
    %v553 = vmul.f32 %v505, %v531
    %v554 = vmul.f32 %v506, %v531
    %v555 = vmul.f32 %v507, %v532
    %v556 = vmul.f32 %v508, %v532
    %v557 = vmul.f32 %v509, %v532
    %v558 = vmul.f32 %v510, %v532
    %v559 = vmul.f32 %v511, %v533
    %v560 = vmul.f32 %v512, %v533
    %v561 = vmul.f32 %v513, %v533
    %v562 = vmul.f32 %v514, %v533
    %v563 = vmul.f32 %v515, %v534
    %v564 = vmul.f32 %v516, %v534
    %v565 = vmul.f32 %v517, %v534
    %v566 = vmul.f32 %v518, %v534
    %567 = vset.pattern.permute.xlu0 1
    %568 = vperm.xlu0 %567, %v44
    %v569 = vpop.permute.xlu0 %568
    %571 = vset.pattern.permute.xlu0 1
    %572 = vperm.xlu0 %571, %v45
    %v573 = vpop.permute.xlu0 %572
    %575 = vset.pattern.permute.xlu0 1
    %576 = vperm.xlu0 %575, %v46
    %v577 = vpop.permute.xlu0 %576
    %579 = vset.pattern.permute.xlu0 1
    %580 = vperm.xlu0 %579, %v47
    %v581 = vpop.permute.xlu0 %580
    %583 = vset.pattern.permute.xlu0 1
    %584 = vperm.xlu0 %583, %v48
    %v585 = vpop.permute.xlu0 %584
    %587 = vset.pattern.permute.xlu0 1
    %588 = vperm.xlu0 %587, %v49
    %v589 = vpop.permute.xlu0 %588
    %591 = vset.pattern.permute.xlu0 1
    %592 = vperm.xlu0 %591, %v50
    %v593 = vpop.permute.xlu0 %592
    %595 = vset.pattern.permute.xlu0 1
    %596 = vperm.xlu0 %595, %v51
    %v597 = vpop.permute.xlu0 %596
    %v599 = vmul.f32 %v535, %v569
    %v600 = vmul.f32 %v536, %v569
    %v601 = vmul.f32 %v537, %v569
    %v602 = vmul.f32 %v538, %v569
    %v603 = vmul.f32 %v539, %v573
    %v604 = vmul.f32 %v540, %v573
    %v605 = vmul.f32 %v541, %v573
    %v606 = vmul.f32 %v542, %v573
    %v607 = vmul.f32 %v543, %v577
    %v608 = vmul.f32 %v544, %v577
    %v609 = vmul.f32 %v545, %v577
    %v610 = vmul.f32 %v546, %v577
    %v611 = vmul.f32 %v547, %v581
    %v612 = vmul.f32 %v548, %v581
    %v613 = vmul.f32 %v549, %v581
    %v614 = vmul.f32 %v550, %v581
    %v615 = vmul.f32 %v551, %v585
    %v616 = vmul.f32 %v552, %v585
    %v617 = vmul.f32 %v553, %v585
    %v618 = vmul.f32 %v554, %v585
    %v619 = vmul.f32 %v555, %v589
    %v620 = vmul.f32 %v556, %v589
    %v621 = vmul.f32 %v557, %v589
    %v622 = vmul.f32 %v558, %v589
    %v623 = vmul.f32 %v559, %v593
    %v624 = vmul.f32 %v560, %v593
    %v625 = vmul.f32 %v561, %v593
    %v626 = vmul.f32 %v562, %v593
    %v627 = vmul.f32 %v563, %v597
    %v628 = vmul.f32 %v564, %v597
    %v629 = vmul.f32 %v565, %v597
    %v630 = vmul.f32 %v566, %v597
    %631 = vset.pattern.permute.xlu0 2
    %632 = vperm.xlu0 %631, %v44
    %v633 = vpop.permute.xlu0 %632
    %635 = vset.pattern.permute.xlu0 2
    %636 = vperm.xlu0 %635, %v45
    %v637 = vpop.permute.xlu0 %636
    %639 = vset.pattern.permute.xlu0 2
    %640 = vperm.xlu0 %639, %v46
    %v641 = vpop.permute.xlu0 %640
    %643 = vset.pattern.permute.xlu0 2
    %644 = vperm.xlu0 %643, %v47
    %v645 = vpop.permute.xlu0 %644
    %647 = vset.pattern.permute.xlu0 2
    %648 = vperm.xlu0 %647, %v48
    %v649 = vpop.permute.xlu0 %648
    %651 = vset.pattern.permute.xlu0 2
    %652 = vperm.xlu0 %651, %v49
    %v653 = vpop.permute.xlu0 %652
    %655 = vset.pattern.permute.xlu0 2
    %656 = vperm.xlu0 %655, %v50
    %v657 = vpop.permute.xlu0 %656
    %659 = vset.pattern.permute.xlu0 2
    %660 = vperm.xlu0 %659, %v51
    %v661 = vpop.permute.xlu0 %660
    %v663 = vadd.f32 %v599, %v633
    %v664 = vadd.f32 %v600, %v633
    %v665 = vadd.f32 %v601, %v633
    %v666 = vadd.f32 %v602, %v633
    %v667 = vadd.f32 %v603, %v637
    %v668 = vadd.f32 %v604, %v637
    %v669 = vadd.f32 %v605, %v637
    %v670 = vadd.f32 %v606, %v637
    %v671 = vadd.f32 %v607, %v641
    %v672 = vadd.f32 %v608, %v641
    %v673 = vadd.f32 %v609, %v641
    %v674 = vadd.f32 %v610, %v641
    %v675 = vadd.f32 %v611, %v645
    %v676 = vadd.f32 %v612, %v645
    %v677 = vadd.f32 %v613, %v645
    %v678 = vadd.f32 %v614, %v645
    %v679 = vadd.f32 %v615, %v649
    %v680 = vadd.f32 %v616, %v649
    %v681 = vadd.f32 %v617, %v649
    %v682 = vadd.f32 %v618, %v649
    %v683 = vadd.f32 %v619, %v653
    %v684 = vadd.f32 %v620, %v653
    %v685 = vadd.f32 %v621, %v653
    %v686 = vadd.f32 %v622, %v653
    %v687 = vadd.f32 %v623, %v657
    %v688 = vadd.f32 %v624, %v657
    %v689 = vadd.f32 %v625, %v657
    %v690 = vadd.f32 %v626, %v657
    %v691 = vadd.f32 %v627, %v661
    %v692 = vadd.f32 %v628, %v661
    %v693 = vadd.f32 %v629, %v661
    %v694 = vadd.f32 %v630, %v661
    %v695 = vadd.f32 %v663, %v679
    %v696 = vadd.f32 %v664, %v680
    %v697 = vadd.f32 %v665, %v681
    %v698 = vadd.f32 %v666, %v682
    %v699 = vadd.f32 %v667, %v683
    %v700 = vadd.f32 %v668, %v684
    %v701 = vadd.f32 %v669, %v685
    %v702 = vadd.f32 %v670, %v686
    %v703 = vadd.f32 %v671, %v687
    %v704 = vadd.f32 %v672, %v688
    %v705 = vadd.f32 %v673, %v689
    %v706 = vadd.f32 %v674, %v690
    %v707 = vadd.f32 %v675, %v691
    %v708 = vadd.f32 %v676, %v692
    %v709 = vadd.f32 %v677, %v693
    %v710 = vadd.f32 %v678, %v694
    %v711 = vmax.f32 %v695, 0.0
    %v712 = vmax.f32 %v696, 0.0
    %v713 = vmax.f32 %v697, 0.0
    %v714 = vmax.f32 %v698, 0.0
    %v715 = vmax.f32 %v699, 0.0
    %v716 = vmax.f32 %v700, 0.0
    %v717 = vmax.f32 %v701, 0.0
    %v718 = vmax.f32 %v702, 0.0
    %v719 = vmax.f32 %v703, 0.0
    %v720 = vmax.f32 %v704, 0.0
    %v721 = vmax.f32 %v705, 0.0
    %v722 = vmax.f32 %v706, 0.0
    %v723 = vmax.f32 %v707, 0.0
    %v724 = vmax.f32 %v708, 0.0
    %v725 = vmax.f32 %v709, 0.0
    %v726 = vmax.f32 %v710, 0.0
    %727 = vset.pattern.permute.xlu0 3
    %728 = vperm.xlu0 %727, %v44
    %v729 = vpop.permute.xlu0 %728
    %731 = vset.pattern.permute.xlu0 3
    %732 = vperm.xlu0 %731, %v45
    %v733 = vpop.permute.xlu0 %732
    %735 = vset.pattern.permute.xlu0 3
    %736 = vperm.xlu0 %735, %v46
    %v737 = vpop.permute.xlu0 %736
    %739 = vset.pattern.permute.xlu0 3
    %740 = vperm.xlu0 %739, %v47
    %v741 = vpop.permute.xlu0 %740
    %v743 = vmul.f32 %v729, %v711
    %v744 = vmul.f32 %v729, %v712
    %v745 = vmul.f32 %v729, %v713
    %v746 = vmul.f32 %v729, %v714
    %v747 = vmul.f32 %v733, %v715
    %v748 = vmul.f32 %v733, %v716
    %v749 = vmul.f32 %v733, %v717
    %v750 = vmul.f32 %v733, %v718
    %v751 = vmul.f32 %v737, %v719
    %v752 = vmul.f32 %v737, %v720
    %v753 = vmul.f32 %v737, %v721
    %v754 = vmul.f32 %v737, %v722
    %v755 = vmul.f32 %v741, %v723
    %v756 = vmul.f32 %v741, %v724
    %v757 = vmul.f32 %v741, %v725
    %v758 = vmul.f32 %v741, %v726
    %v759 = vadd.f32 %v743, %v747
    %v760 = vadd.f32 %v759, %v751
    %v761 = vadd.f32 %v760, %v755
    %v762 = vrot.slane %v761, 4
    %v763 = vadd.f32 %v761, %v762
    %v764 = vrot.slane %v763, 2
    %v765 = vadd.f32 %v763, %v764
    %v766 = vrot.slane %v765, 1
    %v767 = vadd.f32 %v765, %v766
    %v768 = vadd.f32 %v744, %v748
    %v769 = vadd.f32 %v768, %v752
    %v770 = vadd.f32 %v769, %v756
    %v771 = vrot.slane %v770, 4
    %v772 = vadd.f32 %v770, %v771
    %v773 = vrot.slane %v772, 2
    %v774 = vadd.f32 %v772, %v773
    %v775 = vrot.slane %v774, 1
    %v776 = vadd.f32 %v774, %v775
    %v777 = vadd.f32 %v745, %v749
    %v778 = vadd.f32 %v777, %v753
    %v779 = vadd.f32 %v778, %v757
    %v780 = vrot.slane %v779, 4
    %v781 = vadd.f32 %v779, %v780
    %v782 = vrot.slane %v781, 2
    %v783 = vadd.f32 %v781, %v782
    %v784 = vrot.slane %v783, 1
    %v785 = vadd.f32 %v783, %v784
    %v786 = vadd.f32 %v746, %v750
    %v787 = vadd.f32 %v786, %v754
    %v788 = vadd.f32 %v787, %v758
    %v789 = vrot.slane %v788, 4
    %v790 = vadd.f32 %v788, %v789
    %v791 = vrot.slane %v790, 2
    %v792 = vadd.f32 %v790, %v791
    %v793 = vrot.slane %v792, 1
    %v794 = vadd.f32 %v792, %v793
    %795 = vset.pattern.permute.xlu0 4
    %796 = vperm.xlu0 %795, %v44
    %v797 = vpop.permute.xlu0 %796
    %v799 = vadd.f32 %v767, %v797
    %v800 = vadd.f32 %v776, %v797
    %v801 = vadd.f32 %v785, %v797
    %v802 = vadd.f32 %v794, %v797
    %vm803 = vcmask 1040384
    %v804 = vsel %vm803, %v799, 0.0
    %v805 = vsel %vm803, %v800, 0.0
    %v806 = vadd.f32 %v804, %v805
    %v807 = vsel %vm803, %v801, 0.0
    %v808 = vadd.f32 %v806, %v807
    %v809 = vsel %vm803, %v802, 0.0
    %v810 = vadd.f32 %v808, %v809
    %811 = vadd.xlane.f32.xlu0 %v810
    %v812 = vpop.xlane.xlu0 %811
    %v813 = vmul.f32 %v812, 0.001953125
    %v814 = vmul.f32 %v799, %v799
    %v815 = vmul.f32 %v800, %v800
    %v816 = vmul.f32 %v801, %v801
    %v817 = vmul.f32 %v802, %v802
    %v818 = vsel %vm803, %v814, 0.0
    %v819 = vsel %vm803, %v815, 0.0
    %v820 = vadd.f32 %v818, %v819
    %v821 = vsel %vm803, %v816, 0.0
    %v822 = vadd.f32 %v820, %v821
    %v823 = vsel %vm803, %v817, 0.0
    %v824 = vadd.f32 %v822, %v823
    %825 = vadd.xlane.f32.xlu0 %v824
    %v826 = vpop.xlane.xlu0 %825
    %v827 = vmul.f32 %v826, 0.001953125
    %v828 = vmul.f32 %v813, %v813
    %v829 = vsub.f32 %v827, %v828
    %v830 = vsub.f32 %v799, %v813
    %v831 = vsub.f32 %v800, %v813
    %v832 = vsub.f32 %v801, %v813
    %v833 = vsub.f32 %v802, %v813
    %v834 = vadd.f32 %v829, 1e-05
    %v835 = vrsqrt.pop %v834
    %v836 = vmul.f32 %v830, %v835
    %v837 = vmul.f32 %v831, %v835
    %v838 = vmul.f32 %v832, %v835
    %v839 = vmul.f32 %v833, %v835
    %840 = vset.pattern.permute.xlu0 5
    %841 = vperm.xlu0 %840, %v44
    %v842 = vpop.permute.xlu0 %841
    %v844 = vmul.f32 %v836, %v842
    %v845 = vmul.f32 %v837, %v842
    %v846 = vmul.f32 %v838, %v842
    %v847 = vmul.f32 %v839, %v842
    %848 = vset.pattern.permute.xlu0 6
    %849 = vperm.xlu0 %848, %v44
    %v850 = vpop.permute.xlu0 %849
    %v852 = vadd.f32 %v844, %v850
    %v853 = vadd.f32 %v845, %v850
    %v854 = vadd.f32 %v846, %v850
    %v855 = vadd.f32 %v847, %v850
    %v856 = vxor.u32 %v852, 2147483648
    %v857 = vxor.u32 %v853, 2147483648
    %v858 = vxor.u32 %v854, 2147483648
    %v859 = vxor.u32 %v855, 2147483648
    %v860 = vmul.f32 %v856, 1.442695
    %v861 = vpow.pop %v860
    %v862 = vmul.f32 %v857, 1.442695
    %v863 = vpow.pop %v862
    %v864 = vmul.f32 %v858, 1.442695
    %v865 = vpow.pop %v864
    %v866 = vmul.f32 %v859, 1.442695
    %v867 = vpow.pop %v866
    %v868 = vadd.f32 %v861, 1.0
    %v869 = vadd.f32 %v863, 1.0
    %v870 = vadd.f32 %v865, 1.0
    %v871 = vadd.f32 %v867, 1.0
    %v872 = vrcp.pop %v868
    %v873 = vmul.f32 1.0, %v872
    %v874 = vrcp.pop %v869
    %v875 = vmul.f32 1.0, %v874
    %v876 = vrcp.pop %v870
    %v877 = vmul.f32 1.0, %v876
    %v878 = vrcp.pop %v871
    %v879 = vmul.f32 1.0, %v878
    %v880 = vlaneseq
    %v881 = vshrl.u32 %v880, 7
    %v882 = vsub.s32 0, %v881
    %v883 = vrot.slane %v873, %v882
    %v884 = vlaneseq
    %v885 = vshrl.u32 %v884, 7
    %v886 = vsub.s32 0, %v885
    %v887 = vrot.slane %v875, %v886
    %v888 = vlaneseq
    %v889 = vshrl.u32 %v888, 7
    %v890 = vsub.s32 0, %v889
    %v891 = vrot.slane %v877, %v890
    %v892 = vlaneseq
    %v893 = vshrl.u32 %v892, 7
    %v894 = vsub.s32 0, %v893
    %v895 = vrot.slane %v879, %v894
    %v900 = vcombine.low %v883, %v887
    %v901 = vcombine.low %v891, %v895
    %v904 = vmul.f32 %v34, %v900
    %v905 = vmul.f32 %v35, %v901
    %906 = vst [vmem:[#allocation5] sm:$0xff] %v904
    %907 = vst [vmem:[#allocation5 + $0x8] sm:$0xff] %v905
    // Predicated region
    $region22: #{tpu_custom_call.1} parent=1 // pred_check
      _
    $region23: #{tpu_custom_call.1} parent=1 // pred_check_branch
      %909 = sbr.rel (0) target = $region25
    $region24: #{tpu_custom_call.1} parent=1 // pred_region
      %s911 = ssub.s32 256, 256
      %912 = vsyncadd [#allocation4], %s911
      %s914 = sshll.u32 [#allocation5], 4
      %s915 = int_to_ptr.vmem [resolvable:$true] %s914
      %917 = dma.vmem_to_hbm [thread:$0]  %s915, 256, %s4, [#allocation4]
    $region25: #{tpu_custom_call.1} parent=1 // pred_fallthru
      _
    // Predicated region
    $region26: #{tpu_custom_call.1} parent=1 // pred_check
      _
    $region27: #{tpu_custom_call.1} parent=1 // pred_check_branch
      %919 = sbr.rel (0) target = $region29
    $region28: #{tpu_custom_call.1} parent=1 // pred_region
      %920 = dma.done [#allocation4], 256
    $region29: #{tpu_custom_call.1} parent=1 // pred_fallthru
      _
    %921 = vsyncpa [#allocation3], 1
    %922 = vsyncpa [#allocation4], 1

</llo_original>
